<compile_context>
chip_gen: v5e
topology: v5e:2x2
jax: 0.10.0
libtpu: 0.0.40
codegen_flags: <defaults>
</compile_context>

<pallas_src>
import jax
import jax.numpy as jnp
from jax.experimental import pallas as pl
from jax.experimental.pallas import tpu as pltpu

HIDDEN_SIZE = 5
INPUT_SIZE = 784
NUM_CLASSES = 10

LANE = 128            # lane-dense padding target for hidden / class dims
SUBLANE = 8           # batch tiles are kept sublane aligned
MAX_BATCH_TILE = 2048  # ~15.4 MiB total VMEM with double buffering


def _round_up(n, m):
    return (n + m - 1) // m * m


def mlp_kernel(x_ref, w1_ref, b1_ref, w2_ref, b2_ref, out_ref):
    # fc1: (TB, 784) @ (784, 128) on the MXU, f32 accumulation.
    h = jnp.dot(x_ref[...], w1_ref[...], preferred_element_type=jnp.float32)
    # Bias add + ReLU in f32 (no bf16 VALU dependence on v5e).
    h = jnp.maximum(h + b1_ref[...], 0.0)
    # fc2: (TB, 128) @ (128, 128) — lane-dense, fused in the same kernel.
    o = jnp.dot(h.astype(w2_ref.dtype), w2_ref[...],
                preferred_element_type=jnp.float32)
    out_ref[...] = (o + b2_ref[...]).astype(out_ref.dtype)


def mlp_forward(x, w1_t, b1, w2_t, b2, *, compute_dtype=jnp.float32,
                return_padded=False):
    """x: (B, 784); w1_t: (784, 5); b1: (5,); w2_t: (5, 10); b2: (10,).

    Returns (B, 10) f32 logits matching PyTorch fc2(relu(fc1(x)))
    (or the lane-padded (B, 128) block if return_padded=True).
    """
    B = x.shape[0]
    Hp = LANE   # hidden padded to 128 lanes
    Cp = LANE   # classes padded to 128 lanes

    # Zero-pad the tiny feature dims to full lane width (exact: padded hidden
    # columns are 0 after ReLU, padded output columns are 0 and sliced away).
    w1_p = jnp.zeros((INPUT_SIZE, Hp), compute_dtype)
    w1_p = w1_p.at[:, :HIDDEN_SIZE].set(w1_t.astype(compute_dtype))
    b1_p = jnp.zeros((1, Hp), jnp.float32)
    b1_p = b1_p.at[0, :HIDDEN_SIZE].set(b1.astype(jnp.float32))
    w2_p = jnp.zeros((Hp, Cp), compute_dtype)
    w2_p = w2_p.at[:HIDDEN_SIZE, :NUM_CLASSES].set(w2_t.astype(compute_dtype))
    b2_p = jnp.zeros((1, Cp), jnp.float32)
    b2_p = b2_p.at[0, :NUM_CLASSES].set(b2.astype(jnp.float32))

    # Only cast x if the dtype actually changes (avoid an extra HBM pass).
    if x.dtype != compute_dtype:
        x = x.astype(compute_dtype)

    # Batch tile: VMEM-safe cap, and for non-tiny batches keep >= 2 tiles so
    # both v7x TensorCores are fed.  No padding of x — the last grid step is a
    # boundary block (no cross-row reduction, so OOB rows are harmless).
    if B <= 2 * SUBLANE:
        TB = B  # single full-extent block; allowed even when B % 8 != 0
    else:
        TB = min(MAX_BATCH_TILE, _round_up(pl.cdiv(B, 2), SUBLANE))
    n_tiles = pl.cdiv(B, TB)

    bytes_per_el = jnp.dtype(compute_dtype).itemsize
    cost = pl.CostEstimate(
        flops=2 * B * (INPUT_SIZE * Hp + Hp * Cp),
        transcendentals=0,
        bytes_accessed=(B * INPUT_SIZE * bytes_per_el                 # x
                        + (INPUT_SIZE * Hp + Hp * Cp) * bytes_per_el  # weights
                        + 2 * Hp * 4                                  # biases
                        + B * Cp * 4),                                # out
    )

    out_padded = pl.pallas_call(
        mlp_kernel,
        out_shape=jax.ShapeDtypeStruct((B, Cp), jnp.float32),
        grid_spec=pltpu.PrefetchScalarGridSpec(
            num_scalar_prefetch=0,
            grid=(n_tiles,),
            in_specs=[
                pl.BlockSpec((TB, INPUT_SIZE), lambda i: (i, 0)),   # x: pipelined
                pl.BlockSpec((INPUT_SIZE, Hp), lambda i: (0, 0)),   # w1: resident
                pl.BlockSpec((1, Hp), lambda i: (0, 0)),            # b1: resident
                pl.BlockSpec((Hp, Cp), lambda i: (0, 0)),           # w2: resident
                pl.BlockSpec((1, Cp), lambda i: (0, 0)),            # b2: resident
            ],
            out_specs=pl.BlockSpec((TB, Cp), lambda i: (i, 0)),
        ),
        compiler_params=pltpu.CompilerParams(
            dimension_semantics=("parallel",),   # shards batch across TCs on v7x
            vmem_limit_bytes=32 << 20,           # covers v5e's 16 MiB default scoped limit
        ),
        cost_estimate=cost,
    )(x, w1_p, b1_p, w2_p, b2_p)

    if return_padded:
        return out_padded          # consumer fuses the lane slice itself
    return out_padded[:, :NUM_CLASSES]


def init_params(key):
    """Deterministic init mimicking nn.Linear's uniform(-1/sqrt(fan_in), 1/sqrt(fan_in))."""
    k1, k2, k3, k4 = jax.random.split(key, 4)
    bound1 = 1.0 / jnp.sqrt(INPUT_SIZE)
    bound2 = 1.0 / jnp.sqrt(HIDDEN_SIZE)
    # Stored pre-transposed: (in, out), matching y = x @ W.T + b of nn.Linear.
    w1_t = jax.random.uniform(k1, (INPUT_SIZE, HIDDEN_SIZE), jnp.float32,
                              minval=-bound1, maxval=bound1)
    b1 = jax.random.uniform(k2, (HIDDEN_SIZE,), jnp.float32,
                            minval=-bound1, maxval=bound1)
    w2_t = jax.random.uniform(k3, (HIDDEN_SIZE, NUM_CLASSES), jnp.float32,
                              minval=-bound2, maxval=bound2)
    b2 = jax.random.uniform(k4, (NUM_CLASSES,), jnp.float32,
                            minval=-bound2, maxval=bound2)
    return w1_t, b1, w2_t, b2


if __name__ == "__main__":
    key = jax.random.PRNGKey(0)
    kx, kp = jax.random.split(key)
    batch = 2
    x = jax.random.normal(kx, (batch, INPUT_SIZE), jnp.float32)
    w1_t, b1, w2_t, b2 = init_params(kp)

    out = mlp_forward(x, w1_t, b1, w2_t, b2)   # f32 path -> tight tolerance
    out = jax.block_until_ready(out)

    # Reference in plain JAX (same math as the PyTorch forward).
    ref = jnp.maximum(x @ w1_t + b1, 0.0) @ w2_t + b2
    assert out.shape == (batch, NUM_CLASSES)
    assert jnp.allclose(out, ref, atol=1e-5, rtol=1e-5)

    # Batch that is not sublane/tile aligned: exercises the multi-tile path
    # with a ragged boundary block (37 rows -> TB=24, 2 grid steps).
    x2 = jax.random.normal(kx, (37, INPUT_SIZE), jnp.float32)
    out2 = jax.block_until_ready(mlp_forward(x2, w1_t, b1, w2_t, b2))
    ref2 = jnp.maximum(x2 @ w1_t + b1, 0.0) @ w2_t + b2
    assert out2.shape == (37, NUM_CLASSES)
    assert jnp.allclose(out2, ref2, atol=1e-5, rtol=1e-5)

    print("KERNEL_OK")
</pallas_src>

<mosaic_0001>
module attributes {stable_mosaic.version = 11 : i64} {
  func.func @mlp_kernel(%arg0: i32, %arg1: memref<2x784xf32, #tpu.memory_space<vmem>>, %arg2: memref<784x128xf32, #tpu.memory_space<vmem>>, %arg3: memref<1x128xf32, #tpu.memory_space<vmem>>, %arg4: memref<128x128xf32, #tpu.memory_space<vmem>>, %arg5: memref<1x128xf32, #tpu.memory_space<vmem>>, %arg6: memref<2x128xf32, #tpu.memory_space<vmem>>) attributes {dimension_semantics = [#tpu.dimension_semantics<parallel>], iteration_bounds = array<i64: 1>, scalar_prefetch = 0 : i64, scratch_operands = 0 : i64, tpu.core_type = #tpu.core_type<tc>, window_params = [{transform_indices = @transform_0, window_bounds = array<i64: 2, 784>}, {pipeline_mode = #tpu.pipeline_mode<synchronous>, transform_indices = @transform_1, window_bounds = array<i64: 784, 128>}, {pipeline_mode = #tpu.pipeline_mode<synchronous>, transform_indices = @transform_2, window_bounds = array<i64: 1, 128>}, {pipeline_mode = #tpu.pipeline_mode<synchronous>, transform_indices = @transform_3, window_bounds = array<i64: 128, 128>}, {pipeline_mode = #tpu.pipeline_mode<synchronous>, transform_indices = @transform_4, window_bounds = array<i64: 1, 128>}, {transform_indices = @transform_5, window_bounds = array<i64: 2, 128>}]} {
    %c0 = arith.constant 0 : index
    %c0_0 = arith.constant 0 : index
    %0 = vector.load %arg1[%c0, %c0_0] : memref<2x784xf32, #tpu.memory_space<vmem>>, vector<2x784xf32>
    %c0_1 = arith.constant 0 : index
    %c0_2 = arith.constant 0 : index
    %1 = vector.load %arg2[%c0_1, %c0_2] : memref<784x128xf32, #tpu.memory_space<vmem>>, vector<784x128xf32>
    %cst = arith.constant dense<0.000000e+00> : vector<2x128xf32>
    %2 = tpu.matmul %0, %1, %cst {dimension_numbers = #tpu.dot_dimension_numbers<[1], [0], [0], [1], [0, 0, 1, 1], [], []>} : vector<2x784xf32>, vector<784x128xf32>, vector<2x128xf32> -> vector<2x128xf32>
    %c0_3 = arith.constant 0 : index
    %c0_4 = arith.constant 0 : index
    %3 = vector.load %arg3[%c0_3, %c0_4] : memref<1x128xf32, #tpu.memory_space<vmem>>, vector<1x128xf32>
    %4 = vector.broadcast %3 : vector<1x128xf32> to vector<2x128xf32>
    %5 = arith.addf %2, %4 : vector<2x128xf32>
    %cst_5 = arith.constant 0.000000e+00 : f32
    %6 = vector.broadcast %cst_5 : f32 to vector<2x128xf32>
    %7 = arith.maximumf %5, %6 : vector<2x128xf32>
    %c0_6 = arith.constant 0 : index
    %c0_7 = arith.constant 0 : index
    %8 = vector.load %arg4[%c0_6, %c0_7] : memref<128x128xf32, #tpu.memory_space<vmem>>, vector<128x128xf32>
    %cst_8 = arith.constant dense<0.000000e+00> : vector<2x128xf32>
    %9 = tpu.matmul %7, %8, %cst_8 {dimension_numbers = #tpu.dot_dimension_numbers<[1], [0], [0], [1], [0, 0, 1, 1], [], []>} : vector<2x128xf32>, vector<128x128xf32>, vector<2x128xf32> -> vector<2x128xf32>
    %c0_9 = arith.constant 0 : index
    %c0_10 = arith.constant 0 : index
    %10 = vector.load %arg5[%c0_9, %c0_10] : memref<1x128xf32, #tpu.memory_space<vmem>>, vector<1x128xf32>
    %11 = vector.broadcast %10 : vector<1x128xf32> to vector<2x128xf32>
    %12 = arith.addf %9, %11 : vector<2x128xf32>
    %c0_11 = arith.constant 0 : index
    %c0_12 = arith.constant 0 : index
    %13 = vector.load %arg6[%c0_11, %c0_12] : memref<2x128xf32, #tpu.memory_space<vmem>>, vector<2x128xf32>
    tpu.vector_store %arg6[%c0_11, %c0_12], %12 {strides = array<i32>} : memref<2x128xf32, #tpu.memory_space<vmem>>, vector<2x128xf32>,
    return
  }
  func.func @transform_0(%arg0: i32) -> (i32, i32) {
    %c0_i32 = arith.constant 0 : i32
    %c0_i32_0 = arith.constant 0 : i32
    return %arg0, %c0_i32 : i32, i32
  }
  func.func @transform_1(%arg0: i32) -> (i32, i32) {
    %c0_i32 = arith.constant 0 : i32
    %c0_i32_0 = arith.constant 0 : i32
    %c0_i32_1 = arith.constant 0 : i32
    return %c0_i32, %c0_i32_0 : i32, i32
  }
  func.func @transform_2(%arg0: i32) -> (i32, i32) {
    %c0_i32 = arith.constant 0 : i32
    %c0_i32_0 = arith.constant 0 : i32
    %c0_i32_1 = arith.constant 0 : i32
    return %c0_i32, %c0_i32_0 : i32, i32
  }
  func.func @transform_3(%arg0: i32) -> (i32, i32) {
    %c0_i32 = arith.constant 0 : i32
    %c0_i32_0 = arith.constant 0 : i32
    %c0_i32_1 = arith.constant 0 : i32
    return %c0_i32, %c0_i32_0 : i32, i32
  }
  func.func @transform_4(%arg0: i32) -> (i32, i32) {
    %c0_i32 = arith.constant 0 : i32
    %c0_i32_0 = arith.constant 0 : i32
    %c0_i32_1 = arith.constant 0 : i32
    return %c0_i32, %c0_i32_0 : i32, i32
  }
  func.func @transform_5(%arg0: i32) -> (i32, i32) {
    %c0_i32 = arith.constant 0 : i32
    %c0_i32_0 = arith.constant 0 : i32
    return %arg0, %c0_i32 : i32, i32
  }
}

</mosaic_0001>

<llo_original>
// kernel: tpu_custom_call.1
$region0: #{tpu_custom_call.1}
  #allocation0 [shape = 'u32[]', space=smem, size = 0x4, offset = 0x4, fixed_abs, tag = 'smem constant byte address 0x4 - core index']
  #allocation1 [shape = 'u32[72,128]{1,0:T(1,128)}', space=vmem, size = 0x9000, scoped, tag = 'internal scratch']
  %s0 = inlined_call_operand.hbm [shape: f32[2,784], index: 0, kind: input, shape index: {}]
  %s1 = inlined_call_operand.hbm [shape: f32[784,128], index: 1, kind: input, shape index: {}]
  %s2 = inlined_call_operand.vmem [shape: f32[1,128], index: 2, kind: input, shape index: {}]
  %s3 = inlined_call_operand.hbm [shape: f32[128,128], index: 3, kind: input, shape index: {}]
  %s4 = inlined_call_operand.vmem [shape: f32[1,128], index: 4, kind: input, shape index: {}]
  %s5 = inlined_call_operand.hbm [shape: f32[2,128], index: 5, kind: output, shape index: {}]
  %s6 = sld [smem:[#allocation0]]
  $region42: #{tpu_custom_call.1} parent=0
    _
  %s8 = ssub.s32 1, %s6
  %s9 = scalar_select 0, %s8, %s6
  $region1: #{tpu_custom_call.1} parent=0
    #allocation2 [shape = 'u8[7168]{0}', space=vmem, size = 0x1c00, scoped, tag = 'input window, operand 0, single buffered']
    #allocation3 [shape = 's32[1]{0}', space=sflag, size = 0x4, scoped, tag = 'scoped memory for tpu_custom_call.1']
    #allocation4 [shape = 's32[1]{0}', space=sflag, size = 0x4, scoped, tag = 'scoped memory for tpu_custom_call.1']
    #allocation5 [shape = 'u8[401408]{0}', space=vmem, size = 0x62000, scoped, tag = 'input window, operand 1, single buffered']
    #allocation6 [shape = 's32[1]{0}', space=sflag, size = 0x4, scoped, tag = 'scoped memory for tpu_custom_call.1']
    #allocation7 [shape = 'u8[65536]{0}', space=vmem, size = 0x10000, scoped, tag = 'input window, operand 3, single buffered']
    #allocation8 [shape = 'u8[1024]{0}', space=vmem, size = 0x400, scoped, tag = 'output window, operand 0, single buffered']
    %10 = vsyncpa [#allocation3], 0
    %11 = vsyncpa [#allocation6], 0
    %12 = vsyncpa [#allocation4], 0
    // Predicated region
    $region2: #{tpu_custom_call.1} parent=1 // pred_check
      _
    $region3: #{tpu_custom_call.1} parent=1 // pred_check_branch
      %14 = sbr.rel (0) target = $region5
    $region4: #{tpu_custom_call.1} parent=1 // pred_region
      %16 = vsyncadd [#allocation3], 0
      %s18 = sshll.u32 %s0, 4
      %s19 = int_to_ptr.hbm [resolvable:$true] %s18
      %s20 = sshll.u32 [#allocation2], 4
      %s21 = int_to_ptr.vmem [resolvable:$true] %s20
      %23 = dma.hbm_to_vmem [thread:$0]  %s19, 224, %s21, [#allocation3]
    $region5: #{tpu_custom_call.1} parent=1 // pred_fallthru
      _
    // Predicated region
    $region6: #{tpu_custom_call.1} parent=1 // pred_check
      _
    $region7: #{tpu_custom_call.1} parent=1 // pred_check_branch
      %25 = sbr.rel (0) target = $region9
    $region8: #{tpu_custom_call.1} parent=1 // pred_region
      %27 = vsyncadd [#allocation6], 0
      %s28 = sshll.u32 %s1, 4
      %s29 = int_to_ptr.hbm [resolvable:$true] %s28
      %s30 = sshll.u32 [#allocation5], 4
      %s31 = int_to_ptr.vmem [resolvable:$true] %s30
      %36 = dma.hbm_to_vmem [thread:$0]  %s29, 12544, %s31, [#allocation6], 128, 128, 8
    $region9: #{tpu_custom_call.1} parent=1 // pred_fallthru
      _
    // Predicated region
    $region10: #{tpu_custom_call.1} parent=1 // pred_check
      _
    $region11: #{tpu_custom_call.1} parent=1 // pred_check_branch
      %38 = sbr.rel (0) target = $region13
    $region12: #{tpu_custom_call.1} parent=1 // pred_region
      _
    $region13: #{tpu_custom_call.1} parent=1 // pred_fallthru
      _
    // Predicated region
    $region14: #{tpu_custom_call.1} parent=1 // pred_check
      _
    $region15: #{tpu_custom_call.1} parent=1 // pred_check_branch
      %40 = sbr.rel (0) target = $region17
    $region16: #{tpu_custom_call.1} parent=1 // pred_region
      %42 = vsyncadd [#allocation6], 0
      %s43 = sshll.u32 %s3, 4
      %s44 = int_to_ptr.hbm [resolvable:$true] %s43
      %s45 = sshll.u32 [#allocation7], 4
      %s46 = int_to_ptr.vmem [resolvable:$true] %s45
      %51 = dma.hbm_to_vmem [thread:$0]  %s44, 2048, %s46, [#allocation6], 128, 128, 8
    $region17: #{tpu_custom_call.1} parent=1 // pred_fallthru
      _
    // Predicated region
    $region18: #{tpu_custom_call.1} parent=1 // pred_check
      _
    $region19: #{tpu_custom_call.1} parent=1 // pred_check_branch
      %53 = sbr.rel (0) target = $region21
    $region20: #{tpu_custom_call.1} parent=1 // pred_region
      _
    $region21: #{tpu_custom_call.1} parent=1 // pred_fallthru
      _
    // Predicated region
    $region22: #{tpu_custom_call.1} parent=1 // pred_check
      _
    $region23: #{tpu_custom_call.1} parent=1 // pred_check_branch
      %55 = sbr.rel (0) target = $region25
    $region24: #{tpu_custom_call.1} parent=1 // pred_region
      %57 = dma.done [#allocation3], 224
    $region25: #{tpu_custom_call.1} parent=1 // pred_fallthru
      _
    // Predicated region
    $region26: #{tpu_custom_call.1} parent=1 // pred_check
      _
    $region27: #{tpu_custom_call.1} parent=1 // pred_check_branch
      %59 = sbr.rel (0) target = $region29
    $region28: #{tpu_custom_call.1} parent=1 // pred_region
      %61 = dma.done [#allocation6], 12544
    $region29: #{tpu_custom_call.1} parent=1 // pred_fallthru
      _
    // Predicated region
    $region30: #{tpu_custom_call.1} parent=1 // pred_check
      _
    $region31: #{tpu_custom_call.1} parent=1 // pred_check_branch
      %63 = sbr.rel (0) target = $region33
    $region32: #{tpu_custom_call.1} parent=1 // pred_region
      %65 = dma.done [#allocation6], 2048
    $region33: #{tpu_custom_call.1} parent=1 // pred_fallthru
      _
    %v66 = vld [vmem:[#allocation2] sm:$0xff]
    %v67 = vld [vmem:[#allocation2 + $0x8] sm:$0x3f]
    %v68 = vld [vmem:[#allocation5] sm:$0xff]
    %v69 = vld [vmem:[#allocation5 + $0x8] sm:$0xff]
    %v70 = vld [vmem:[#allocation5 + $0x10] sm:$0xff]
    %v71 = vld [vmem:[#allocation5 + $0x18] sm:$0xff]
    %v72 = vld [vmem:[#allocation5 + $0x20] sm:$0xff]
    %v73 = vld [vmem:[#allocation5 + $0x28] sm:$0xff]
    %v74 = vld [vmem:[#allocation5 + $0x30] sm:$0xff]
    %v75 = vld [vmem:[#allocation5 + $0x38] sm:$0xff]
    %v76 = vld [vmem:[#allocation5 + $0x40] sm:$0xff]
    %v77 = vld [vmem:[#allocation5 + $0x48] sm:$0xff]
    %v78 = vld [vmem:[#allocation5 + $0x50] sm:$0xff]
    %v79 = vld [vmem:[#allocation5 + $0x58] sm:$0xff]
    %v80 = vld [vmem:[#allocation5 + $0x60] sm:$0xff]
    %v81 = vld [vmem:[#allocation5 + $0x68] sm:$0xff]
    %v82 = vld [vmem:[#allocation5 + $0x70] sm:$0xff]
    %v83 = vld [vmem:[#allocation5 + $0x78] sm:$0xff]
    %v84 = vld [vmem:[#allocation5 + $0x80] sm:$0xff]
    %v85 = vld [vmem:[#allocation5 + $0x88] sm:$0xff]
    %v86 = vld [vmem:[#allocation5 + $0x90] sm:$0xff]
    %v87 = vld [vmem:[#allocation5 + $0x98] sm:$0xff]
    %v88 = vld [vmem:[#allocation5 + $0xa0] sm:$0xff]
    %v89 = vld [vmem:[#allocation5 + $0xa8] sm:$0xff]
    %v90 = vld [vmem:[#allocation5 + $0xb0] sm:$0xff]
    %v91 = vld [vmem:[#allocation5 + $0xb8] sm:$0xff]
    %v92 = vld [vmem:[#allocation5 + $0xc0] sm:$0xff]
    %v93 = vld [vmem:[#allocation5 + $0xc8] sm:$0xff]
    %v94 = vld [vmem:[#allocation5 + $0xd0] sm:$0xff]
    %v95 = vld [vmem:[#allocation5 + $0xd8] sm:$0xff]
    %v96 = vld [vmem:[#allocation5 + $0xe0] sm:$0xff]
    %v97 = vld [vmem:[#allocation5 + $0xe8] sm:$0xff]
    %v98 = vld [vmem:[#allocation5 + $0xf0] sm:$0xff]
    %v99 = vld [vmem:[#allocation5 + $0xf8] sm:$0xff]
    %v100 = vld [vmem:[#allocation5 + $0x100] sm:$0xff]
    %v101 = vld [vmem:[#allocation5 + $0x108] sm:$0xff]
    %v102 = vld [vmem:[#allocation5 + $0x110] sm:$0xff]
    %v103 = vld [vmem:[#allocation5 + $0x118] sm:$0xff]
    %v104 = vld [vmem:[#allocation5 + $0x120] sm:$0xff]
    %v105 = vld [vmem:[#allocation5 + $0x128] sm:$0xff]
    %v106 = vld [vmem:[#allocation5 + $0x130] sm:$0xff]
    %v107 = vld [vmem:[#allocation5 + $0x138] sm:$0xff]
    %v108 = vld [vmem:[#allocation5 + $0x140] sm:$0xff]
    %v109 = vld [vmem:[#allocation5 + $0x148] sm:$0xff]
    %v110 = vld [vmem:[#allocation5 + $0x150] sm:$0xff]
    %v111 = vld [vmem:[#allocation5 + $0x158] sm:$0xff]
    %v112 = vld [vmem:[#allocation5 + $0x160] sm:$0xff]
    %v113 = vld [vmem:[#allocation5 + $0x168] sm:$0xff]
    %v114 = vld [vmem:[#allocation5 + $0x170] sm:$0xff]
    %v115 = vld [vmem:[#allocation5 + $0x178] sm:$0xff]
    %v116 = vld [vmem:[#allocation5 + $0x180] sm:$0xff]
    %v117 = vld [vmem:[#allocation5 + $0x188] sm:$0xff]
    %v118 = vld [vmem:[#allocation5 + $0x190] sm:$0xff]
    %v119 = vld [vmem:[#allocation5 + $0x198] sm:$0xff]
    %v120 = vld [vmem:[#allocation5 + $0x1a0] sm:$0xff]
    %v121 = vld [vmem:[#allocation5 + $0x1a8] sm:$0xff]
    %v122 = vld [vmem:[#allocation5 + $0x1b0] sm:$0xff]
    %v123 = vld [vmem:[#allocation5 + $0x1b8] sm:$0xff]
    %v124 = vld [vmem:[#allocation5 + $0x1c0] sm:$0xff]
    %v125 = vld [vmem:[#allocation5 + $0x1c8] sm:$0xff]
    %v126 = vld [vmem:[#allocation5 + $0x1d0] sm:$0xff]
    %v127 = vld [vmem:[#allocation5 + $0x1d8] sm:$0xff]
    %v128 = vld [vmem:[#allocation5 + $0x1e0] sm:$0xff]
    %v129 = vld [vmem:[#allocation5 + $0x1e8] sm:$0xff]
    %v130 = vld [vmem:[#allocation5 + $0x1f0] sm:$0xff]
    %v131 = vld [vmem:[#allocation5 + $0x1f8] sm:$0xff]
    %v132 = vld [vmem:[#allocation5 + $0x200] sm:$0xff]
    %v133 = vld [vmem:[#allocation5 + $0x208] sm:$0xff]
    %v134 = vld [vmem:[#allocation5 + $0x210] sm:$0xff]
    %v135 = vld [vmem:[#allocation5 + $0x218] sm:$0xff]
    %v136 = vld [vmem:[#allocation5 + $0x220] sm:$0xff]
    %v137 = vld [vmem:[#allocation5 + $0x228] sm:$0xff]
    %v138 = vld [vmem:[#allocation5 + $0x230] sm:$0xff]
    %v139 = vld [vmem:[#allocation5 + $0x238] sm:$0xff]
    %v140 = vld [vmem:[#allocation5 + $0x240] sm:$0xff]
    %v141 = vld [vmem:[#allocation5 + $0x248] sm:$0xff]
    %v142 = vld [vmem:[#allocation5 + $0x250] sm:$0xff]
    %v143 = vld [vmem:[#allocation5 + $0x258] sm:$0xff]
    %v144 = vld [vmem:[#allocation5 + $0x260] sm:$0xff]
    %v145 = vld [vmem:[#allocation5 + $0x268] sm:$0xff]
    %v146 = vld [vmem:[#allocation5 + $0x270] sm:$0xff]
    %v147 = vld [vmem:[#allocation5 + $0x278] sm:$0xff]
    %v148 = vld [vmem:[#allocation5 + $0x280] sm:$0xff]
    %v149 = vld [vmem:[#allocation5 + $0x288] sm:$0xff]
    %v150 = vld [vmem:[#allocation5 + $0x290] sm:$0xff]
    %v151 = vld [vmem:[#allocation5 + $0x298] sm:$0xff]
    %v152 = vld [vmem:[#allocation5 + $0x2a0] sm:$0xff]
    %v153 = vld [vmem:[#allocation5 + $0x2a8] sm:$0xff]
    %v154 = vld [vmem:[#allocation5 + $0x2b0] sm:$0xff]
    %v155 = vld [vmem:[#allocation5 + $0x2b8] sm:$0xff]
    %v156 = vld [vmem:[#allocation5 + $0x2c0] sm:$0xff]
    %v157 = vld [vmem:[#allocation5 + $0x2c8] sm:$0xff]
    %v158 = vld [vmem:[#allocation5 + $0x2d0] sm:$0xff]
    %v159 = vld [vmem:[#allocation5 + $0x2d8] sm:$0xff]
    %v160 = vld [vmem:[#allocation5 + $0x2e0] sm:$0xff]
    %v161 = vld [vmem:[#allocation5 + $0x2e8] sm:$0xff]
    %v162 = vld [vmem:[#allocation5 + $0x2f0] sm:$0xff]
    %v163 = vld [vmem:[#allocation5 + $0x2f8] sm:$0xff]
    %v164 = vld [vmem:[#allocation5 + $0x300] sm:$0xff]
    %v165 = vld [vmem:[#allocation5 + $0x308] sm:$0xff]
    %v166 = vld [vmem:[%s2] sm:$0x1]
    %v168 = vperm.slane %v166, 0
    %172 = vst [vmem:[#allocation1] ss:$4 sm:$0xff] %v66
    %s173 = scalar_lea.vmem [#allocation1], 32
    %174 = vst [vmem:[%s173] ss:$4 sm:$0xff] %v67
    %v175 = vld.sshfl [vmem:[#allocation1] sm:$0xff pattern:$0x73625140]
    %v176 = vld.sshfl [vmem:[#allocation1 + $0x8] sm:$0xff pattern:$0x73625140]
    %v177 = vld.sshfl [vmem:[#allocation1 + $0x10] sm:$0xff pattern:$0x73625140]
    %v178 = vld.sshfl [vmem:[#allocation1 + $0x18] sm:$0xff pattern:$0x73625140]
    %v179 = vld.sshfl [vmem:[#allocation1 + $0x20] sm:$0xff pattern:$0x73625140]
    %v180 = vld.sshfl [vmem:[#allocation1 + $0x28] sm:$0xff pattern:$0x73625140]
    %v181 = vld.sshfl [vmem:[#allocation1 + $0x30] sm:$0xff pattern:$0x73625140]
    %vm188 = vcmask 130048
    %v189 = vsel %vm188, %v181, 0
    %191 = vmatpush.msra.mxu0 %v83
    %192 = vmatpush.msra.mxu0 %v82
    %193 = vmatpush.msra.mxu0 %v81
    %194 = vmatpush.msra.mxu0 %v80
    %195 = vmatpush.msra.mxu0 %v79
    %196 = vmatpush.msra.mxu0 %v78
    %197 = vmatpush.msra.mxu0 %v77
    %198 = vmatpush.msra.mxu0 %v76
    %199 = vmatpush.msra.mxu0 %v75
    %200 = vmatpush.msra.mxu0 %v74
    %201 = vmatpush.msra.mxu0 %v73
    %202 = vmatpush.msra.mxu0 %v72
    %203 = vmatpush.msra.mxu0 %v71
    %204 = vmatpush.msra.mxu0 %v70
    %205 = vmatpush.msra.mxu0 %v69
    %206 = vmatpush.msra.mxu0 %v68
    %207 = vmatmul.f32.gmra.mxu0 %v175
    %v208 = vpop.f32.mrf.mxu0
    %v209 = vadd.f32 %v168, %v208
    %210 = vdwg.mxu0
    %211 = vmatpush.msra.mxu0 %v99
    %212 = vmatpush.msra.mxu0 %v98
    %213 = vmatpush.msra.mxu0 %v97
    %214 = vmatpush.msra.mxu0 %v96
    %215 = vmatpush.msra.mxu0 %v95
    %216 = vmatpush.msra.mxu0 %v94
    %217 = vmatpush.msra.mxu0 %v93
    %218 = vmatpush.msra.mxu0 %v92
    %219 = vmatpush.msra.mxu0 %v91
    %220 = vmatpush.msra.mxu0 %v90
    %221 = vmatpush.msra.mxu0 %v89
    %222 = vmatpush.msra.mxu0 %v88
    %223 = vmatpush.msra.mxu0 %v87
    %224 = vmatpush.msra.mxu0 %v86
    %225 = vmatpush.msra.mxu0 %v85
    %226 = vmatpush.msra.mxu0 %v84
    %227 = vmatmul.f32.gmra.mxu0 %v176
    %v228 = vpop.f32.mrf.mxu0
    %v229 = vadd.f32 %v209, %v228
    %230 = vdwg.mxu0
    %231 = vmatpush.msra.mxu0 %v115
    %232 = vmatpush.msra.mxu0 %v114
    %233 = vmatpush.msra.mxu0 %v113
    %234 = vmatpush.msra.mxu0 %v112
    %235 = vmatpush.msra.mxu0 %v111
    %236 = vmatpush.msra.mxu0 %v110
    %237 = vmatpush.msra.mxu0 %v109
    %238 = vmatpush.msra.mxu0 %v108
    %239 = vmatpush.msra.mxu0 %v107
    %240 = vmatpush.msra.mxu0 %v106
    %241 = vmatpush.msra.mxu0 %v105
    %242 = vmatpush.msra.mxu0 %v104
    %243 = vmatpush.msra.mxu0 %v103
    %244 = vmatpush.msra.mxu0 %v102
    %245 = vmatpush.msra.mxu0 %v101
    %246 = vmatpush.msra.mxu0 %v100
    %247 = vmatmul.f32.gmra.mxu0 %v177
    %v248 = vpop.f32.mrf.mxu0
    %v249 = vadd.f32 %v229, %v248
    %250 = vdwg.mxu0
    %251 = vmatpush.msra.mxu0 %v131
    %252 = vmatpush.msra.mxu0 %v130
    %253 = vmatpush.msra.mxu0 %v129
    %254 = vmatpush.msra.mxu0 %v128
    %255 = vmatpush.msra.mxu0 %v127
    %256 = vmatpush.msra.mxu0 %v126
    %257 = vmatpush.msra.mxu0 %v125
    %258 = vmatpush.msra.mxu0 %v124
    %259 = vmatpush.msra.mxu0 %v123
    %260 = vmatpush.msra.mxu0 %v122
    %261 = vmatpush.msra.mxu0 %v121
    %262 = vmatpush.msra.mxu0 %v120
    %263 = vmatpush.msra.mxu0 %v119
    %264 = vmatpush.msra.mxu0 %v118
    %265 = vmatpush.msra.mxu0 %v117
    %266 = vmatpush.msra.mxu0 %v116
    %267 = vmatmul.f32.gmra.mxu0 %v178
    %v268 = vpop.f32.mrf.mxu0
    %v269 = vadd.f32 %v249, %v268
    %270 = vdwg.mxu0
    %271 = vmatpush.msra.mxu0 %v147
    %272 = vmatpush.msra.mxu0 %v146
    %273 = vmatpush.msra.mxu0 %v145
    %274 = vmatpush.msra.mxu0 %v144
    %275 = vmatpush.msra.mxu0 %v143
    %276 = vmatpush.msra.mxu0 %v142
    %277 = vmatpush.msra.mxu0 %v141
    %278 = vmatpush.msra.mxu0 %v140
    %279 = vmatpush.msra.mxu0 %v139
    %280 = vmatpush.msra.mxu0 %v138
    %281 = vmatpush.msra.mxu0 %v137
    %282 = vmatpush.msra.mxu0 %v136
    %283 = vmatpush.msra.mxu0 %v135
    %284 = vmatpush.msra.mxu0 %v134
    %285 = vmatpush.msra.mxu0 %v133
    %286 = vmatpush.msra.mxu0 %v132
    %287 = vmatmul.f32.gmra.mxu0 %v179
    %v288 = vpop.f32.mrf.mxu0
    %v289 = vadd.f32 %v269, %v288
    %290 = vdwg.mxu0
    %291 = vmatpush.msra.mxu0 %v163
    %292 = vmatpush.msra.mxu0 %v162
    %293 = vmatpush.msra.mxu0 %v161
    %294 = vmatpush.msra.mxu0 %v160
    %295 = vmatpush.msra.mxu0 %v159
    %296 = vmatpush.msra.mxu0 %v158
    %297 = vmatpush.msra.mxu0 %v157
    %298 = vmatpush.msra.mxu0 %v156
    %299 = vmatpush.msra.mxu0 %v155
    %300 = vmatpush.msra.mxu0 %v154
    %301 = vmatpush.msra.mxu0 %v153
    %302 = vmatpush.msra.mxu0 %v152
    %303 = vmatpush.msra.mxu0 %v151
    %304 = vmatpush.msra.mxu0 %v150
    %305 = vmatpush.msra.mxu0 %v149
    %306 = vmatpush.msra.mxu0 %v148
    %307 = vmatmul.f32.gmra.mxu0 %v180
    %v308 = vpop.f32.mrf.mxu0
    %v309 = vadd.f32 %v289, %v308
    %310 = vdwg.mxu0
    %311 = vmatpush.msra.mxu0 0.0
    %312 = vmatpush.msra.mxu0 0.0
    %313 = vmatpush.msra.mxu0 0.0
    %314 = vmatpush.msra.mxu0 0.0
    %315 = vmatpush.msra.mxu0 0.0
    %316 = vmatpush.msra.mxu0 0.0
    %317 = vmatpush.msra.mxu0 0.0
    %318 = vmatpush.msra.mxu0 0.0
    %319 = vmatpush.msra.mxu0 0.0
    %320 = vmatpush.msra.mxu0 0.0
    %321 = vmatpush.msra.mxu0 0.0
    %322 = vmatpush.msra.mxu0 0.0
    %323 = vmatpush.msra.mxu0 0.0
    %324 = vmatpush.msra.mxu0 0.0
    %325 = vmatpush.msra.mxu0 %v165
    %326 = vmatpush.msra.mxu0 %v164
    %327 = vmatmul.f32.gmra.mxu0 %v189
    %v328 = vpop.f32.mrf.mxu0
    %v329 = vadd.f32 %v309, %v328
    %330 = vdwg.mxu0
    %v331 = vmax.f32 %v329, 0.0
    %v332 = vld [vmem:[#allocation7] sm:$0xff]
    %v333 = vld [vmem:[#allocation7 + $0x8] sm:$0xff]
    %v334 = vld [vmem:[#allocation7 + $0x10] sm:$0xff]
    %v335 = vld [vmem:[#allocation7 + $0x18] sm:$0xff]
    %v336 = vld [vmem:[#allocation7 + $0x20] sm:$0xff]
    %v337 = vld [vmem:[#allocation7 + $0x28] sm:$0xff]
    %v338 = vld [vmem:[#allocation7 + $0x30] sm:$0xff]
    %v339 = vld [vmem:[#allocation7 + $0x38] sm:$0xff]
    %v340 = vld [vmem:[#allocation7 + $0x40] sm:$0xff]
    %v341 = vld [vmem:[#allocation7 + $0x48] sm:$0xff]
    %v342 = vld [vmem:[#allocation7 + $0x50] sm:$0xff]
    %v343 = vld [vmem:[#allocation7 + $0x58] sm:$0xff]
    %v344 = vld [vmem:[#allocation7 + $0x60] sm:$0xff]
    %v345 = vld [vmem:[#allocation7 + $0x68] sm:$0xff]
    %v346 = vld [vmem:[#allocation7 + $0x70] sm:$0xff]
    %v347 = vld [vmem:[#allocation7 + $0x78] sm:$0xff]
    %v348 = vld [vmem:[%s4] sm:$0x1]
    %v350 = vperm.slane %v348, 0
    %352 = vmatpush.msra.mxu0 %v347
    %353 = vmatpush.msra.mxu0 %v346
    %354 = vmatpush.msra.mxu0 %v345
    %355 = vmatpush.msra.mxu0 %v344
    %356 = vmatpush.msra.mxu0 %v343
    %357 = vmatpush.msra.mxu0 %v342
    %358 = vmatpush.msra.mxu0 %v341
    %359 = vmatpush.msra.mxu0 %v340
    %360 = vmatpush.msra.mxu0 %v339
    %361 = vmatpush.msra.mxu0 %v338
    %362 = vmatpush.msra.mxu0 %v337
    %363 = vmatpush.msra.mxu0 %v336
    %364 = vmatpush.msra.mxu0 %v335
    %365 = vmatpush.msra.mxu0 %v334
    %366 = vmatpush.msra.mxu0 %v333
    %367 = vmatpush.msra.mxu0 %v332
    %368 = vmatmul.f32.gmra.mxu0 %v331
    %v369 = vpop.f32.mrf.mxu0
    %v370 = vadd.f32 %v350, %v369
    %371 = vdwg.mxu0
    %372 = vst [vmem:[#allocation8] sm:$0x3] %v370
    // Predicated region
    $region34: #{tpu_custom_call.1} parent=1 // pred_check
      _
    $region35: #{tpu_custom_call.1} parent=1 // pred_check_branch
      %374 = sbr.rel (0) target = $region37
    $region36: #{tpu_custom_call.1} parent=1 // pred_region
      %376 = vsyncadd [#allocation4], 0
      %s378 = sshll.u32 [#allocation8], 4
      %s379 = int_to_ptr.vmem [resolvable:$true] %s378
      %s380 = sshll.u32 %s5, 4
      %s381 = int_to_ptr.hbm [resolvable:$true] %s380
      %383 = dma.vmem_to_hbm [thread:$0]  %s379, 32, %s381, [#allocation4]
    $region37: #{tpu_custom_call.1} parent=1 // pred_fallthru
      _
    // Predicated region
    $region38: #{tpu_custom_call.1} parent=1 // pred_check
      _
    $region39: #{tpu_custom_call.1} parent=1 // pred_check_branch
      %385 = sbr.rel (0) target = $region41
    $region40: #{tpu_custom_call.1} parent=1 // pred_region
      %387 = dma.done [#allocation4], 32
    $region41: #{tpu_custom_call.1} parent=1 // pred_fallthru
      _
    %388 = vsyncpa [#allocation3], 1
    %389 = vsyncpa [#allocation6], 1
    %390 = vsyncpa [#allocation4], 1

</llo_original>
